<compile_context>
chip_gen: v7x
topology: tpu7x:2x2x1
jax: 0.10.0
libtpu: 0.0.40
codegen_flags: <defaults>
</compile_context>

<pallas_src>
import jax
import jax.numpy as jnp
from jax.experimental import pallas as pl
from jax.experimental.pallas import tpu as pltpu

BN_EPS = 1e-5


def se_kernel(x_ref, w1t_ref, b1_ref, w2t_ref, o_ref):
    # x_ref:   (NB, C, HW)   NB batch elements
    # w1t_ref: (C, E)        BN-folded first 1x1 conv weight, transposed
    # b1_ref:  (1, E)        BN-folded bias
    # w2t_ref: (E, C)        second 1x1 conv weight, transposed
    # o_ref:   (NB, C, HW)
    x = x_ref[...]                                            # (NB, C, HW) f32
    hw = x.shape[-1]

    # --- squeeze: global average pool over spatial (lane axis) ---
    pooled = jnp.sum(x, axis=2) * (1.0 / hw)                  # (NB, C)

    # --- excite: 1x1 conv (C -> E) with folded BatchNorm, then ReLU ---
    h = jnp.dot(pooled, w1t_ref[...],
                preferred_element_type=jnp.float32) + b1_ref[...]   # (NB, E)
    h = jnp.maximum(h, 0.0)

    # --- 1x1 conv (E -> C) + Hardsigmoid ---
    g = jnp.dot(h, w2t_ref[...], preferred_element_type=jnp.float32)  # (NB, C)
    g = jnp.clip((g + 3.0) * (1.0 / 6.0), 0.0, 1.0)

    # --- scale: per-channel gate broadcast over spatial ---
    # Re-read x_ref (cheap VMEM load) instead of keeping `x` live across the
    # reduce -> matmul -> matmul chain.
    o_ref[...] = x_ref[...] * g[:, :, None]


def _pick_nb(N, C, HW, itemsize=4, vmem_budget=48 << 20):
    """Pick how many batch elements to process per grid step."""
    per_n = C * HW * itemsize
    # x and out blocks, each double-buffered by the pipeline: 4 * block bytes.
    max_nb_vmem = max(1, vmem_budget // (4 * per_n))
    # Keep at least 2 grid steps when N >= 2 so both v7x TensorCores get work.
    cap = max(1, N // 2) if N >= 2 else 1
    nb = max(1, min(N, max_nb_vmem, cap))
    # Largest divisor of N not exceeding nb (avoids partial trailing blocks).
    while N % nb != 0:
        nb -= 1
    return nb


def se_module(x_nchw, w1, gamma, beta, run_mean, run_var, w2):
    """x_nchw: (N, C, H, W) float32. Returns (N, C, H, W)."""
    N, C, H, W = x_nchw.shape
    E = w1.shape[0]
    HW = H * W  # best when a multiple of 128 (otherwise masked partial-lane stores)
    x3 = x_nchw.reshape(N, C, HW)

    # Fold eval-mode BatchNorm into the first 1x1 conv (host side).
    s = gamma * jax.lax.rsqrt(run_var + BN_EPS)               # (E,)
    w1t = (s[:, None] * w1).T                                 # (C, E)
    b1 = (beta - run_mean * s).reshape(1, E)                  # (1, E)
    w2t = w2.T                                                # (E, C)

    NB = _pick_nb(N, C, HW)
    grid = (N // NB,)

    # Explicit VMEM budget: in+out double-buffered blocks + weights + headroom,
    # clamped to 64 MiB so it is also valid on v7x (64 MiB physical VMEM).
    block_bytes = NB * C * HW * 4
    weight_bytes = (C * E + E + E * C) * 4
    needed = 4 * block_bytes + 4 * weight_bytes + (4 << 20)
    vmem_limit = int(min(max(needed, 32 << 20), 64 << 20))

    out = pl.pallas_call(
        se_kernel,
        out_shape=jax.ShapeDtypeStruct((N, C, HW), jnp.float32),
        grid_spec=pltpu.PrefetchScalarGridSpec(
            num_scalar_prefetch=0,
            grid=grid,
            in_specs=[
                pl.BlockSpec((NB, C, HW), lambda n: (n, 0, 0)),
                pl.BlockSpec((C, E), lambda n: (0, 0)),
                pl.BlockSpec((1, E), lambda n: (0, 0)),
                pl.BlockSpec((E, C), lambda n: (0, 0)),
            ],
            out_specs=pl.BlockSpec((NB, C, HW), lambda n: (n, 0, 0)),
        ),
        compiler_params=pltpu.CompilerParams(
            dimension_semantics=("parallel",),
            vmem_limit_bytes=vmem_limit),
    )(x3, w1t, b1, w2t)
    return out.reshape(N, C, H, W)


def se_module_ref(x, w1, gamma, beta, run_mean, run_var, w2):
    """Pure-JAX reference (mirrors PyTorch eval-mode forward)."""
    pooled = jnp.mean(x, axis=(2, 3))                         # (N, C)
    h = pooled @ w1.T                                         # (N, E)
    h = (h - run_mean) / jnp.sqrt(run_var + BN_EPS) * gamma + beta
    h = jnp.maximum(h, 0.0)
    g = h @ w2.T                                              # (N, C)
    g = jnp.clip((g + 3.0) / 6.0, 0.0, 1.0)
    return x * g[:, :, None, None]


if __name__ == "__main__":
    # Small shapes consistent with the module: in_size=4 -> expand_size=max(4//4, 8)=8
    N, C, H, W = 2, 4, 16, 16
    E = max(C // 4, 8)

    key = jax.random.PRNGKey(0)
    kx, k1, k2, kg, kb, km, kv = jax.random.split(key, 7)

    x = jax.random.normal(kx, (N, C, H, W), dtype=jnp.float32)
    w1 = jax.random.normal(k1, (E, C), dtype=jnp.float32) * 0.3   # Conv2d(C->E, 1x1, bias=False)
    w2 = jax.random.normal(k2, (C, E), dtype=jnp.float32) * 0.3   # Conv2d(E->C, 1x1, bias=False)
    gamma = 1.0 + 0.1 * jax.random.normal(kg, (E,), dtype=jnp.float32)
    beta = 0.1 * jax.random.normal(kb, (E,), dtype=jnp.float32)
    run_mean = 0.1 * jax.random.normal(km, (E,), dtype=jnp.float32)
    run_var = 1.0 + 0.1 * jnp.abs(jax.random.normal(kv, (E,), dtype=jnp.float32))

    out = se_module(x, w1, gamma, beta, run_mean, run_var, w2)
    out = jax.block_until_ready(out)

    ref = se_module_ref(x, w1, gamma, beta, run_mean, run_var, w2)
    assert out.shape == (N, C, H, W)
    assert jnp.allclose(out, ref, atol=1e-4, rtol=1e-4), "mismatch vs reference"

    print("KERNEL_OK")
</pallas_src>

<mosaic_0001>
module attributes {stable_mosaic.version = 11 : i64} {
  func.func @se_kernel(%arg0: i32, %arg1: memref<1x4x256xf32, #tpu.memory_space<vmem>>, %arg2: memref<4x8xf32, #tpu.memory_space<vmem>>, %arg3: memref<1x8xf32, #tpu.memory_space<vmem>>, %arg4: memref<8x4xf32, #tpu.memory_space<vmem>>, %arg5: memref<1x4x256xf32, #tpu.memory_space<vmem>>) attributes {dimension_semantics = [#tpu.dimension_semantics<parallel>], iteration_bounds = array<i64: 2>, scalar_prefetch = 0 : i64, scratch_operands = 0 : i64, tpu.core_type = #tpu.core_type<tc>, window_params = [{transform_indices = @transform_0, window_bounds = array<i64: 1, 4, 256>}, {pipeline_mode = #tpu.pipeline_mode<synchronous>, transform_indices = @transform_1, window_bounds = array<i64: 4, 8>}, {pipeline_mode = #tpu.pipeline_mode<synchronous>, transform_indices = @transform_2, window_bounds = array<i64: 1, 8>}, {pipeline_mode = #tpu.pipeline_mode<synchronous>, transform_indices = @transform_3, window_bounds = array<i64: 8, 4>}, {transform_indices = @transform_4, window_bounds = array<i64: 1, 4, 256>}]} {
    %c0 = arith.constant 0 : index
    %c0_0 = arith.constant 0 : index
    %c0_1 = arith.constant 0 : index
    %0 = vector.load %arg1[%c0, %c0_0, %c0_1] : memref<1x4x256xf32, #tpu.memory_space<vmem>>, vector<1x4x256xf32>
    %cst = arith.constant dense<0.000000e+00> : vector<1x4xf32>
    %1 = vector.multi_reduction <add>, %0, %cst [2] : vector<1x4x256xf32> to vector<1x4xf32>
    %cst_2 = arith.constant 3.906250e-03 : f32
    %2 = vector.broadcast %cst_2 : f32 to vector<1x4xf32>
    %3 = arith.mulf %1, %2 : vector<1x4xf32>
    %c0_3 = arith.constant 0 : index
    %c0_4 = arith.constant 0 : index
    %4 = vector.load %arg2[%c0_3, %c0_4] : memref<4x8xf32, #tpu.memory_space<vmem>>, vector<4x8xf32>
    %cst_5 = arith.constant dense<0.000000e+00> : vector<1x8xf32>
    %5 = tpu.matmul %3, %4, %cst_5 {dimension_numbers = #tpu.dot_dimension_numbers<[1], [0], [0], [1], [0, 0, 1, 1], [], []>} : vector<1x4xf32>, vector<4x8xf32>, vector<1x8xf32> -> vector<1x8xf32>
    %c0_6 = arith.constant 0 : index
    %c0_7 = arith.constant 0 : index
    %6 = vector.load %arg3[%c0_6, %c0_7] : memref<1x8xf32, #tpu.memory_space<vmem>>, vector<1x8xf32>
    %7 = arith.addf %5, %6 : vector<1x8xf32>
    %cst_8 = arith.constant 0.000000e+00 : f32
    %8 = vector.broadcast %cst_8 : f32 to vector<1x8xf32>
    %9 = arith.maximumf %7, %8 : vector<1x8xf32>
    %c0_9 = arith.constant 0 : index
    %c0_10 = arith.constant 0 : index
    %10 = vector.load %arg4[%c0_9, %c0_10] : memref<8x4xf32, #tpu.memory_space<vmem>>, vector<8x4xf32>
    %cst_11 = arith.constant dense<0.000000e+00> : vector<1x4xf32>
    %11 = tpu.matmul %9, %10, %cst_11 {dimension_numbers = #tpu.dot_dimension_numbers<[1], [0], [0], [1], [0, 0, 1, 1], [], []>} : vector<1x8xf32>, vector<8x4xf32>, vector<1x4xf32> -> vector<1x4xf32>
    %cst_12 = arith.constant 3.000000e+00 : f32
    %12 = vector.broadcast %cst_12 : f32 to vector<1x4xf32>
    %13 = arith.addf %11, %12 : vector<1x4xf32>
    %cst_13 = arith.constant 0.166666672 : f32
    %14 = vector.broadcast %cst_13 : f32 to vector<1x4xf32>
    %15 = arith.mulf %13, %14 : vector<1x4xf32>
    %cst_14 = arith.constant 0.000000e+00 : f32
    %cst_15 = arith.constant 1.000000e+00 : f32
    %16 = vector.broadcast %cst_14 : f32 to vector<1x4xf32>
    %17 = arith.maximumf %16, %15 : vector<1x4xf32>
    %18 = vector.broadcast %cst_15 : f32 to vector<1x4xf32>
    %19 = arith.minimumf %18, %17 : vector<1x4xf32>
    %c0_16 = arith.constant 0 : index
    %c0_17 = arith.constant 0 : index
    %c0_18 = arith.constant 0 : index
    %20 = vector.load %arg1[%c0_16, %c0_17, %c0_18] : memref<1x4x256xf32, #tpu.memory_space<vmem>>, vector<1x4x256xf32>
    %21 = vector.shape_cast %19 : vector<1x4xf32> to vector<1x4x1xf32>
    %22 = vector.broadcast %21 : vector<1x4x1xf32> to vector<1x4x256xf32>
    %23 = arith.mulf %20, %22 : vector<1x4x256xf32>
    %c0_19 = arith.constant 0 : index
    %c0_20 = arith.constant 0 : index
    %c0_21 = arith.constant 0 : index
    %24 = vector.load %arg5[%c0_19, %c0_20, %c0_21] : memref<1x4x256xf32, #tpu.memory_space<vmem>>, vector<1x4x256xf32>
    tpu.vector_store %arg5[%c0_19, %c0_20, %c0_21], %23 {strides = array<i32>} : memref<1x4x256xf32, #tpu.memory_space<vmem>>, vector<1x4x256xf32>,
    return
  }
  func.func @transform_0(%arg0: i32) -> (i32, i32, i32) {
    %c0_i32 = arith.constant 0 : i32
    %c0_i32_0 = arith.constant 0 : i32
    %c0_i32_1 = arith.constant 0 : i32
    return %arg0, %c0_i32, %c0_i32_0 : i32, i32, i32
  }
  func.func @transform_1(%arg0: i32) -> (i32, i32) {
    %c0_i32 = arith.constant 0 : i32
    %c0_i32_0 = arith.constant 0 : i32
    %c0_i32_1 = arith.constant 0 : i32
    return %c0_i32, %c0_i32_0 : i32, i32
  }
  func.func @transform_2(%arg0: i32) -> (i32, i32) {
    %c0_i32 = arith.constant 0 : i32
    %c0_i32_0 = arith.constant 0 : i32
    %c0_i32_1 = arith.constant 0 : i32
    return %c0_i32, %c0_i32_0 : i32, i32
  }
  func.func @transform_3(%arg0: i32) -> (i32, i32) {
    %c0_i32 = arith.constant 0 : i32
    %c0_i32_0 = arith.constant 0 : i32
    %c0_i32_1 = arith.constant 0 : i32
    return %c0_i32, %c0_i32_0 : i32, i32
  }
  func.func @transform_4(%arg0: i32) -> (i32, i32, i32) {
    %c0_i32 = arith.constant 0 : i32
    %c0_i32_0 = arith.constant 0 : i32
    %c0_i32_1 = arith.constant 0 : i32
    return %arg0, %c0_i32, %c0_i32_0 : i32, i32, i32
  }
}

</mosaic_0001>

<llo_original>
// kernel: tpu_custom_call.1
$region0: #{tpu_custom_call.1}
  #allocation0 [shape = 'u32[]', space=smem, size = 0x4, offset = 0x4, fixed_abs, tag = 'smem constant byte address 0x4 - core index']
  #allocation1 [shape = 'u32[144,128]{1,0:T(1,128)}', space=vmem, size = 0x12000, scoped, tag = 'internal scratch']
  %s0 = inlined_call_operand.hbm [shape: f32[2,4,256], index: 0, kind: input, shape index: {}]
  %s1 = inlined_call_operand.vmem [shape: f32[4,8], index: 1, kind: input, shape index: {}]
  %s2 = inlined_call_operand.vmem [shape: f32[1,8], index: 2, kind: input, shape index: {}]
  %s3 = inlined_call_operand.vmem [shape: f32[8,4], index: 3, kind: input, shape index: {}]
  %s4 = inlined_call_operand.hbm [shape: f32[2,4,256], index: 4, kind: output, shape index: {}]
  %s5 = sld [smem:[#allocation0]]
  $region53: #{tpu_custom_call.1} parent=0
    _
  %s7 = ssub.s32 1, %s5
  %s8 = scalar_select 0, %s7, %s5
  $region1: #{tpu_custom_call.1} parent=0
    #allocation2 [shape = 'u8[8192]{0}', space=vmem, size = 0x2000, scoped, tag = 'input window, operand 0']
    #allocation3 [shape = 's32[2]{0}', space=sflag, size = 0x8, scoped, tag = 'scoped memory for tpu_custom_call.1']
    #allocation4 [shape = 's32[2]{0}', space=sflag, size = 0x8, scoped, tag = 'scoped memory for tpu_custom_call.1']
    #allocation5 [shape = 'u8[8192]{0}', space=vmem, size = 0x2000, scoped, tag = 'output window, operand 0']
    %9 = vsyncpa [#allocation3], 0
    %s10 = scalar_lea.sflag [#allocation3], 1
    %11 = vsyncpa %s10, 0
    %12 = vsyncpa [#allocation4], 0
    %s13 = scalar_lea.sflag [#allocation4], 1
    %14 = vsyncpa %s13, 0
    loop: start=0, step=1, limit=4
    $region2: #{tpu_custom_call.1} parent=1 // loop_pre_header
      _
    $region3: #{tpu_custom_call.1} parent=1 // loop_header
      %s16 = sphi 0, %s20
      %p17 = scmp.ge.s32.totalorder %s16, 4
      %s26 = sphi 0, %s28
      %s29 = sphi 0, %s26
      %s30 = sphi 0, %s29
      %s46 = sphi 0, %s30
      %s50 = sphi 0, %s50
      %s52 = sphi 0, %s50
      %s53 = sphi 0, %s52
      %s67 = sphi 0, %s53
      %s71 = sphi 0, %s71
      %s73 = sphi 0, %s71
      %s74 = sphi 0, %s73
      %s88 = sphi 0, %s74
      %s92 = sphi 0, %s92
      %s94 = sphi 0, %s92
      %s95 = sphi 0, %s94
      %s109 = sphi 0, %s95
      %s115 = sphi 0, %s117
      %s118 = sphi 0, %s115
      %s119 = sphi 0, %s118
      %s135 = sphi 0, %s119
    $region4: #{tpu_custom_call.1} parent=1 // loop_header_branch
      %19 = sbr.rel (%p17) target = $region8
    $region5: #{tpu_custom_call.1} parent=1 // loop_body
      %s21 = ssub.s32 %s16, 1
      %s22 = ssub.s32 %s16, 2
      %s23 = sadd.s32 %s16, 1
      %s24 = ssub.s32 %s16, %s23
      %p25 = scmp.eq.s32.totalorder %s24, 0
      %s27 = sadd.s32 %s26, 1
      %s28 = scalar_select %p25, %s26, %s27
      %p31 = pneg %p25
      %p32 = scmp.eq.s32.totalorder %s16, 1
      %p33 = por %p31, %p32
      %p34 = scmp.ne.s32.totalorder %s26, %s29
      %p35 = scmp.eq.s32.totalorder %s16, 0
      %p36 = por %p34, %p35
      %p37 = scmp.ne.s32.totalorder %s26, %s29
      %p38 = scmp.eq.s32.totalorder %s21, 1
      %p39 = por %p37, %p38
      %p40 = scmp.ne.s32.totalorder %s29, %s30
      %p41 = scmp.eq.s32.totalorder %s21, 0
      %p42 = por %p40, %p41
      %p43 = scmp.ne.s32.totalorder %s29, %s30
      %p44 = scmp.eq.s32.totalorder %s22, 1
      %p45 = por %p43, %p44
      %p47 = scmp.ne.s32.totalorder %s30, %s46
      %p48 = scmp.eq.s32.totalorder %s22, 0
      %p49 = por %p47, %p48
      %s51 = sadd.s32 %s50, 1
      %p54 = scmp.eq.s32.totalorder %s16, 1
      %p55 = scmp.ne.s32.totalorder %s50, %s52
      %p56 = scmp.eq.s32.totalorder %s16, 0
      %p57 = por %p55, %p56
      %p58 = scmp.ne.s32.totalorder %s50, %s52
      %p59 = scmp.eq.s32.totalorder %s21, 1
      %p60 = por %p58, %p59
      %p61 = scmp.ne.s32.totalorder %s52, %s53
      %p62 = scmp.eq.s32.totalorder %s21, 0
      %p63 = por %p61, %p62
      %p64 = scmp.ne.s32.totalorder %s52, %s53
      %p65 = scmp.eq.s32.totalorder %s22, 1
      %p66 = por %p64, %p65
      %p68 = scmp.ne.s32.totalorder %s53, %s67
      %p69 = scmp.eq.s32.totalorder %s22, 0
      %p70 = por %p68, %p69
      %s72 = sadd.s32 %s71, 1
      %p75 = scmp.eq.s32.totalorder %s16, 1
      %p76 = scmp.ne.s32.totalorder %s71, %s73
      %p77 = scmp.eq.s32.totalorder %s16, 0
      %p78 = por %p76, %p77
      %p79 = scmp.ne.s32.totalorder %s71, %s73
      %p80 = scmp.eq.s32.totalorder %s21, 1
      %p81 = por %p79, %p80
      %p82 = scmp.ne.s32.totalorder %s73, %s74
      %p83 = scmp.eq.s32.totalorder %s21, 0
      %p84 = por %p82, %p83
      %p85 = scmp.ne.s32.totalorder %s73, %s74
      %p86 = scmp.eq.s32.totalorder %s22, 1
      %p87 = por %p85, %p86
      %p89 = scmp.ne.s32.totalorder %s74, %s88
      %p90 = scmp.eq.s32.totalorder %s22, 0
      %p91 = por %p89, %p90
      %s93 = sadd.s32 %s92, 1
      %p96 = scmp.eq.s32.totalorder %s16, 1
      %p97 = scmp.ne.s32.totalorder %s92, %s94
      %p98 = scmp.eq.s32.totalorder %s16, 0
      %p99 = por %p97, %p98
      %p100 = scmp.ne.s32.totalorder %s92, %s94
      %p101 = scmp.eq.s32.totalorder %s21, 1
      %p102 = por %p100, %p101
      %p103 = scmp.ne.s32.totalorder %s94, %s95
      %p104 = scmp.eq.s32.totalorder %s21, 0
      %p105 = por %p103, %p104
      %p106 = scmp.ne.s32.totalorder %s94, %s95
      %p107 = scmp.eq.s32.totalorder %s22, 1
      %p108 = por %p106, %p107
      %p110 = scmp.ne.s32.totalorder %s95, %s109
      %p111 = scmp.eq.s32.totalorder %s22, 0
      %p112 = por %p110, %p111
      %s113 = ssub.s32 %s16, %s23
      %p114 = scmp.eq.s32.totalorder %s113, 0
      %s116 = sadd.s32 %s115, 1
      %s117 = scalar_select %p114, %s115, %s116
      %p120 = pneg %p114
      %p121 = scmp.eq.s32.totalorder %s16, 1
      %p122 = por %p120, %p121
      %p123 = scmp.ne.s32.totalorder %s115, %s118
      %p124 = scmp.eq.s32.totalorder %s16, 0
      %p125 = por %p123, %p124
      %p126 = scmp.ne.s32.totalorder %s115, %s118
      %p127 = scmp.eq.s32.totalorder %s21, 1
      %p128 = por %p126, %p127
      %p129 = scmp.ne.s32.totalorder %s118, %s119
      %p130 = scmp.eq.s32.totalorder %s21, 0
      %p131 = por %p129, %p130
      %p132 = scmp.ne.s32.totalorder %s118, %s119
      %p133 = scmp.eq.s32.totalorder %s22, 1
      %p134 = por %p132, %p133
      %p136 = scmp.ne.s32.totalorder %s119, %s135
      %p137 = scmp.eq.s32.totalorder %s22, 0
      %p138 = por %p136, %p137
      %p139 = scmp.le.s32.totalorder 1, %s16
      %p140 = scmp.lt.s32.totalorder %s16, 3
      %p141 = pnand %p139, %p140
      %p142 = pneg %p141
      // Predicated region
      $region9: #{tpu_custom_call.1} parent=5 // pred_check
        _
      $region10: #{tpu_custom_call.1} parent=5 // pred_check_branch
        %144 = sbr.rel (%p141) target = $region12
      $region11: #{tpu_custom_call.1} parent=5 // pred_region
        %s145 = ssub.s32 %s16, 1
        // Predicated region
        $region13: #{tpu_custom_call.1} parent=11 // pred_check
          %p146 = pneg %p63
        $region14: #{tpu_custom_call.1} parent=11 // pred_check_branch
          %148 = sbr.rel (%p146) target = $region16
        $region15: #{tpu_custom_call.1} parent=11 // pred_region
          _
        $region16: #{tpu_custom_call.1} parent=11 // pred_fallthru
          _
        // Predicated region
        $region17: #{tpu_custom_call.1} parent=11 // pred_check
          %p149 = pneg %p84
        $region18: #{tpu_custom_call.1} parent=11 // pred_check_branch
          %151 = sbr.rel (%p149) target = $region20
        $region19: #{tpu_custom_call.1} parent=11 // pred_region
          _
        $region20: #{tpu_custom_call.1} parent=11 // pred_fallthru
          _
        // Predicated region
        $region21: #{tpu_custom_call.1} parent=11 // pred_check
          %p152 = pneg %p105
        $region22: #{tpu_custom_call.1} parent=11 // pred_check_branch
          %154 = sbr.rel (%p152) target = $region24
        $region23: #{tpu_custom_call.1} parent=11 // pred_region
          _
        $region24: #{tpu_custom_call.1} parent=11 // pred_fallthru
          _
      $region12: #{tpu_custom_call.1} parent=5 // pred_fallthru
        _
      %p155 = scmp.lt.s32.totalorder %s16, 2
      // Predicated region
      $region25: #{tpu_custom_call.1} parent=5 // pred_check
        %p156 = pneg %p155
      $region26: #{tpu_custom_call.1} parent=5 // pred_check_branch
        %158 = sbr.rel (%p156) target = $region28
      $region27: #{tpu_custom_call.1} parent=5 // pred_region
        // Predicated region
        $region29: #{tpu_custom_call.1} parent=27 // pred_check
          %p159 = pneg %p36
        $region30: #{tpu_custom_call.1} parent=27 // pred_check_branch
          %161 = sbr.rel (%p159) target = $region32
        $region31: #{tpu_custom_call.1} parent=27 // pred_region
          %s162 = sand.u32 %s26, 1
          %s163 = scalar_lea.sflag [#allocation3], %s162
          %s164 = sand.u32 %s26, 1
          %s165 = smul.addr %s164, 8
          %s166 = scalar_lea.vmem [#allocation2], %s165
          %s168 = ssub.s32 128, 128
          %169 = vsyncadd %s163, %s168
          %s170 = smul.addr %s16, 2
          %s171 = smul.addr %s170, 64
          %s172 = scalar_lea.hbm %s0, %s171
          %s174 = sshll.u32 %s166, 4
          %s175 = int_to_ptr.vmem [resolvable:$true] %s174
          %177 = dma.hbm_to_vmem [thread:$0]  %s172, 128, %s175, %s163
        $region32: #{tpu_custom_call.1} parent=27 // pred_fallthru
          _
      $region28: #{tpu_custom_call.1} parent=5 // pred_fallthru
        _
      %p178 = scmp.le.s32.totalorder 1, %s16
      %p179 = scmp.lt.s32.totalorder %s16, 3
      %p180 = pnand %p178, %p179
      %p181 = pneg %p180
      // Predicated region
      $region33: #{tpu_custom_call.1} parent=5 // pred_check
        _
      $region34: #{tpu_custom_call.1} parent=5 // pred_check_branch
        %183 = sbr.rel (%p180) target = $region36
      $region35: #{tpu_custom_call.1} parent=5 // pred_region
        %s184 = ssub.s32 %s16, 1
        %s185 = sand.u32 %s29, 1
        %s186 = scalar_lea.sflag [#allocation3], %s185
        %s187 = sand.u32 %s29, 1
        %s188 = smul.addr %s187, 8
        %s189 = scalar_lea.vmem [#allocation2], %s188
        // Predicated region
        $region37: #{tpu_custom_call.1} parent=35 // pred_check
          %p190 = pneg %p42
        $region38: #{tpu_custom_call.1} parent=35 // pred_check_branch
          %192 = sbr.rel (%p190) target = $region40
        $region39: #{tpu_custom_call.1} parent=35 // pred_region
          %193 = dma.done %s186, 128
        $region40: #{tpu_custom_call.1} parent=35 // pred_fallthru
          _
        %s194 = sand.u32 %s29, 1
        %s195 = scalar_lea.sflag [#allocation3], %s194
        %s196 = sand.u32 %s29, 1
        %s197 = smul.addr %s196, 8
        %s198 = scalar_lea.vmem [#allocation2], %s197
        %p199 = pneg %p42
        %p200 = pneg %p39
        %p201 = pneg %p63
        %p202 = pneg %p60
        %p203 = pneg %p84
        %p204 = pneg %p81
        %p205 = pneg %p105
        %p206 = pneg %p102
        %p207 = pneg %p131
        %p208 = pneg %p128
        %s209 = sand.u32 %s118, 1
        %s210 = scalar_lea.sflag [#allocation4], %s209
        %s211 = sand.u32 %s118, 1
        %s212 = smul.addr %s211, 8
        %s213 = scalar_lea.vmem [#allocation5], %s212
        %v214 = vld [vmem:[%s189] sm:$0xff]
        %v216 = vcombine.high %v214, %v214
        %vm218 = vcmask 1043456
        %v219 = vsel %vm218, %v214, 0.0
        %v220 = vsel %vm218, %v216, 0.0
        %v221 = vadd.f32 %v219, %v220
        %222 = vadd.xlane.f32.xlu0 %v221
        %v223 = vpop.xlane.xlu0 %222
        %v224 = vmul.f32 %v223, 0.00390625
        %v225 = vld [vmem:[%s1] sm:$0xf]
        %v226 = vld [vmem:[%s2] sm:$0x1]
        %v228 = vlaneseq
        %v229 = vand.u32 %v228, 127
        %v230 = vlaneseq
        %v231 = vshrl.u32 %v230, 7
        %v232 = vsub.s32 %v229, %v231
        %v233 = vrot.slane %v224, %v232
        %vm234 = vcmask 31744
        %v235 = vsel %vm234, %v233, 0
        %v238 = vsel %vm218, %v225, 0
        %240 = vmatprep.subr.mxu0 0.0
        %241 = vmatpush1.msra.mxu0 %v238
        %242 = vmatprep.subr.mxu0 0.0
        %243 = vmatpush1.msra.mxu0 0.0
        %244 = vmatprep.subr.mxu0 0.0
        %245 = vmatpush1.msra.mxu0 0.0
        %246 = vmatprep.subr.mxu0 0.0
        %247 = vmatpush1.msra.mxu0 0.0
        %248 = vmatprep.subr.mxu0 0.0
        %249 = vmatpush1.msra.mxu0 0.0
        %250 = vmatprep.subr.mxu0 0.0
        %251 = vmatpush1.msra.mxu0 0.0
        %252 = vmatprep.subr.mxu0 0.0
        %253 = vmatpush1.msra.mxu0 0.0
        %254 = vmatprep.subr.mxu0 0.0
        %255 = vmatpush1.msra.mxu0 0.0
        %256 = vmatprep.subr.mxu0 0.0
        %257 = vmatpush1.msra.mxu0 0.0
        %258 = vmatprep.subr.mxu0 0.0
        %259 = vmatpush1.msra.mxu0 0.0
        %260 = vmatprep.subr.mxu0 0.0
        %261 = vmatpush1.msra.mxu0 0.0
        %262 = vmatprep.subr.mxu0 0.0
        %263 = vmatpush1.msra.mxu0 0.0
        %264 = vmatprep.subr.mxu0 0.0
        %265 = vmatpush1.msra.mxu0 0.0
        %266 = vmatprep.subr.mxu0 0.0
        %267 = vmatpush1.msra.mxu0 0.0
        %268 = vmatprep.subr.mxu0 0.0
        %269 = vmatpush1.msra.mxu0 0.0
        %270 = vmatprep.subr.mxu0 0.0
        %271 = vmatpush1.msra.mxu0 0.0
        %272 = vmatprep.subr.mxu0 0.0
        %273 = vmatpush1.msra.mxu0 0.0
        %274 = vmatprep.subr.mxu0 0.0
        %275 = vmatpush1.msra.mxu0 0.0
        %276 = vmatprep.subr.mxu0 0.0
        %277 = vmatpush1.msra.mxu0 0.0
        %278 = vmatprep.subr.mxu0 0.0
        %279 = vmatpush1.msra.mxu0 0.0
        %280 = vmatprep.subr.mxu0 0.0
        %281 = vmatpush1.msra.mxu0 0.0
        %282 = vmatprep.subr.mxu0 0.0
        %283 = vmatpush1.msra.mxu0 0.0
        %284 = vmatprep.subr.mxu0 0.0
        %285 = vmatpush1.msra.mxu0 0.0
        %286 = vmatprep.subr.mxu0 0.0
        %287 = vmatpush1.msra.mxu0 0.0
        %288 = vmatprep.subr.mxu0 0.0
        %289 = vmatpush1.msra.mxu0 0.0
        %290 = vmatprep.subr.mxu0 0.0
        %291 = vmatpush1.msra.mxu0 0.0
        %292 = vmatprep.subr.mxu0 0.0
        %293 = vmatpush1.msra.mxu0 0.0
        %294 = vmatprep.subr.mxu0 0.0
        %295 = vmatpush1.msra.mxu0 0.0
        %296 = vmatprep.subr.mxu0 0.0
        %297 = vmatpush1.msra.mxu0 0.0
        %298 = vmatprep.subr.mxu0 0.0
        %299 = vmatpush1.msra.mxu0 0.0
        %300 = vmatprep.subr.mxu0 0.0
        %301 = vmatpush1.msra.mxu0 0.0
        %302 = vmatprep.subr.mxu0 0.0
        %303 = vmatpush1.msra.mxu0 0.0
        %304 = vmatprep.mubr.f32.mxu0 0.0
        %305 = vmatmul.mubr.f32.gmra.mrb[0].mxu0 %v235
        %v306 = vpop.f32.mrb[0].mxu0
        %v307 = vadd.f32 %v226, %v306
        %v308 = vpop.f32.mrb[0].mxu0
        %309 = vdwg.mxu0
        %v310 = vmax.f32 %v307, 0.0
        %v311 = vld [vmem:[%s3] sm:$0xff]
        %vm312 = vcmask 64512
        %v314 = vsel %vm312, %v310, 0
        %316 = vmatprep.subr.mxu0 0.0
        %317 = vmatpush1.msra.mxu0 %v311
        %318 = vmatprep.subr.mxu0 0.0
        %319 = vmatpush1.msra.mxu0 0.0
        %320 = vmatprep.subr.mxu0 0.0
        %321 = vmatpush1.msra.mxu0 0.0
        %322 = vmatprep.subr.mxu0 0.0
        %323 = vmatpush1.msra.mxu0 0.0
        %324 = vmatprep.subr.mxu0 0.0
        %325 = vmatpush1.msra.mxu0 0.0
        %326 = vmatprep.subr.mxu0 0.0
        %327 = vmatpush1.msra.mxu0 0.0
        %328 = vmatprep.subr.mxu0 0.0
        %329 = vmatpush1.msra.mxu0 0.0
        %330 = vmatprep.subr.mxu0 0.0
        %331 = vmatpush1.msra.mxu0 0.0
        %332 = vmatprep.subr.mxu0 0.0
        %333 = vmatpush1.msra.mxu0 0.0
        %334 = vmatprep.subr.mxu0 0.0
        %335 = vmatpush1.msra.mxu0 0.0
        %336 = vmatprep.subr.mxu0 0.0
        %337 = vmatpush1.msra.mxu0 0.0
        %338 = vmatprep.subr.mxu0 0.0
        %339 = vmatpush1.msra.mxu0 0.0
        %340 = vmatprep.subr.mxu0 0.0
        %341 = vmatpush1.msra.mxu0 0.0
        %342 = vmatprep.subr.mxu0 0.0
        %343 = vmatpush1.msra.mxu0 0.0
        %344 = vmatprep.subr.mxu0 0.0
        %345 = vmatpush1.msra.mxu0 0.0
        %346 = vmatprep.subr.mxu0 0.0
        %347 = vmatpush1.msra.mxu0 0.0
        %348 = vmatprep.subr.mxu0 0.0
        %349 = vmatpush1.msra.mxu0 0.0
        %350 = vmatprep.subr.mxu0 0.0
        %351 = vmatpush1.msra.mxu0 0.0
        %352 = vmatprep.subr.mxu0 0.0
        %353 = vmatpush1.msra.mxu0 0.0
        %354 = vmatprep.subr.mxu0 0.0
        %355 = vmatpush1.msra.mxu0 0.0
        %356 = vmatprep.subr.mxu0 0.0
        %357 = vmatpush1.msra.mxu0 0.0
        %358 = vmatprep.subr.mxu0 0.0
        %359 = vmatpush1.msra.mxu0 0.0
        %360 = vmatprep.subr.mxu0 0.0
        %361 = vmatpush1.msra.mxu0 0.0
        %362 = vmatprep.subr.mxu0 0.0
        %363 = vmatpush1.msra.mxu0 0.0
        %364 = vmatprep.subr.mxu0 0.0
        %365 = vmatpush1.msra.mxu0 0.0
        %366 = vmatprep.subr.mxu0 0.0
        %367 = vmatpush1.msra.mxu0 0.0
        %368 = vmatprep.subr.mxu0 0.0
        %369 = vmatpush1.msra.mxu0 0.0
        %370 = vmatprep.subr.mxu0 0.0
        %371 = vmatpush1.msra.mxu0 0.0
        %372 = vmatprep.subr.mxu0 0.0
        %373 = vmatpush1.msra.mxu0 0.0
        %374 = vmatprep.subr.mxu0 0.0
        %375 = vmatpush1.msra.mxu0 0.0
        %376 = vmatprep.subr.mxu0 0.0
        %377 = vmatpush1.msra.mxu0 0.0
        %378 = vmatprep.subr.mxu0 0.0
        %379 = vmatpush1.msra.mxu0 0.0
        %380 = vmatprep.mubr.f32.mxu0 0.0
        %381 = vmatmul.mubr.f32.gmra.mrb[0].mxu0 %v314
        %v382 = vpop.f32.mrb[0].mxu0
        %v383 = vadd.f32 3.0, %v382
        %v384 = vpop.f32.mrb[0].mxu0
        %385 = vdwg.mxu0
        %v386 = vmul.f32 %v383, 0.16666667
        %v387 = vmax.f32 %v386, 0.0
        %v388 = vmin.f32 %v387, 1.0
        %v389 = vlaneseq
        %v390 = vshrl.u32 %v389, 7
        %v391 = vsub.s32 0, %v390
        %v392 = vrot.slane %v388, %v391
        %394 = vbcast.lane.b32.xlu0 %v392, 256
        %v395 = vpop.permute.xlu0 %394
        %v398 = vunpack.c.l.s4 839922192
        %v399 = vunpack.c.0.s8 %v398
        %v400 = vlaneseq
        %v401 = vshrl.u32 %v400, 7
        %v402 = vsub.s32 %v399, %v401
        %v403 = vrot.slane %v395, %v402
        %v405 = vmul.f32 %v214, %v403
        %406 = vst [vmem:[%s213] sm:$0xff] %v405
        %s407 = sand.u32 %s118, 1
        %s408 = scalar_lea.sflag [#allocation4], %s407
        %s409 = sand.u32 %s118, 1
        %s410 = smul.addr %s409, 8
        %s411 = scalar_lea.vmem [#allocation5], %s410
        // Predicated region
        $region41: #{tpu_custom_call.1} parent=35 // pred_check
          %p412 = pneg %p128
        $region42: #{tpu_custom_call.1} parent=35 // pred_check_branch
          %414 = sbr.rel (%p412) target = $region44
        $region43: #{tpu_custom_call.1} parent=35 // pred_region
          %s416 = ssub.s32 128, 128
          %417 = vsyncadd %s408, %s416
          %s418 = smul.addr %s21, 2
          %s419 = smul.addr %s418, 64
          %s420 = scalar_lea.hbm %s4, %s419
          %s422 = sshll.u32 %s411, 4
          %s423 = int_to_ptr.vmem [resolvable:$true] %s422
          %425 = dma.vmem_to_hbm [thread:$0]  %s423, 128, %s420, %s408
        $region44: #{tpu_custom_call.1} parent=35 // pred_fallthru
          _
      $region36: #{tpu_custom_call.1} parent=5 // pred_fallthru
        _
      %p426 = scmp.le.s32.totalorder 2, %s16
      // Predicated region
      $region45: #{tpu_custom_call.1} parent=5 // pred_check
        %p427 = pneg %p426
      $region46: #{tpu_custom_call.1} parent=5 // pred_check_branch
        %429 = sbr.rel (%p427) target = $region48
      $region47: #{tpu_custom_call.1} parent=5 // pred_region
        %s430 = ssub.s32 %s16, 2
        // Predicated region
        $region49: #{tpu_custom_call.1} parent=47 // pred_check
          %p431 = pneg %p134
        $region50: #{tpu_custom_call.1} parent=47 // pred_check_branch
          %433 = sbr.rel (%p431) target = $region52
        $region51: #{tpu_custom_call.1} parent=47 // pred_region
          %s434 = sand.u32 %s119, 1
          %s435 = scalar_lea.sflag [#allocation4], %s434
          %s436 = sand.u32 %s119, 1
          %s437 = smul.addr %s436, 8
          %s438 = scalar_lea.vmem [#allocation5], %s437
          %439 = dma.done %s435, 128
        $region52: #{tpu_custom_call.1} parent=47 // pred_fallthru
          _
      $region48: #{tpu_custom_call.1} parent=5 // pred_fallthru
        _
    $region6: #{tpu_custom_call.1} parent=1 // loop_footer
      %s20 = sadd.s32 1, %s16
    $region7: #{tpu_custom_call.1} parent=1 // loop_footer_branch
      %15 = sbr.rel target = $region3
    $region8: #{tpu_custom_call.1} parent=1 // loop_exit
      _
    %440 = vsyncpa [#allocation3], 1
    %s441 = scalar_lea.sflag [#allocation3], 1
    %442 = vsyncpa %s441, 1
    %443 = vsyncpa [#allocation4], 1
    %s444 = scalar_lea.sflag [#allocation4], 1
    %445 = vsyncpa %s444, 1

</llo_original>
